<compile_context>
chip_gen: v6e
topology: v6e:2x2x1
jax: 0.10.0
libtpu: 0.0.40
codegen_flags: <defaults>
</compile_context>

<pallas_src>
import functools

import jax
import jax.numpy as jnp
from jax.experimental import pallas as pl
from jax.experimental.pallas import tpu as pltpu

INPUT_DIM = 3
HIDDEN_DIM = 100
OUTPUT_DIM = 4


def _mlp_kernel(xt_ref, w1_ref, b1_ref, w2_ref, b2_ref, o_ref, *, apply_softmax):
    # xt_ref: (Dp, TB)  input tile, batch on the lane axis (Dp = D padded to 8)
    # w1_ref: (H, Dp)   fc1 weight (zero-padded columns)
    # b1_ref: (H, 1)    fc1 bias
    # w2_ref: (Op, H)   fc2 weight (zero-padded rows)
    # b2_ref: (Op, 1)   fc2 bias (padded rows = -1e30 so softmax ignores them)
    # o_ref : (Op, TB)  output tile, batch on the lane axis
    xt = xt_ref[...]

    # fc1 on the MXU (K = Dp = 8); bias + ReLU on the VPU.
    h = jnp.dot(w1_ref[...], xt, preferred_element_type=jnp.float32)
    h = jnp.maximum(h + b1_ref[...], 0.0)

    # fc2 on the MXU (K = H = 100); lane-dense (Op, TB) result.
    z = jnp.dot(w2_ref[...], h, preferred_element_type=jnp.float32) + b2_ref[...]

    if apply_softmax:
        # softmax over the output_dim axis (axis 0 in this transposed layout);
        # padded rows have -1e30 logits -> exp underflows to exactly 0.
        z = z - jnp.max(z, axis=0, keepdims=True)
        e = jnp.exp(z)
        z = e * pl.reciprocal(jnp.sum(e, axis=0, keepdims=True), approx=True)

    o_ref[...] = z.astype(o_ref.dtype)


def _round_up(n, m):
    return ((n + m - 1) // m) * m


@functools.partial(jax.jit, static_argnames=("apply_softmax", "block_b"))
def mlp_forward(x, w1, b1, w2, b2, *, apply_softmax=False, block_b=4096):
    """x: (B, D); w1: (H, D); b1: (H,); w2: (O, H); b2: (O,). Returns (B, O)."""
    B, D = x.shape
    H = w1.shape[0]
    O = w2.shape[0]

    D_pad = _round_up(D, 8)   # tiny contraction dim, padded for a clean MXU dot
    O_pad = _round_up(O, 8)   # sublane-dense output stores

    # Batch tile on the lane axis: multiple of 128, capped at block_b, and
    # arranged so the grid has >= 2 steps when possible (v7x: 2 TensorCores).
    b128 = _round_up(max(B, 1), 128)
    if b128 >= 256:
        tb = min(block_b, _round_up((b128 + 1) // 2, 128))
    else:
        tb = b128
    b_pad = _round_up(b128, tb)

    # Transposed, zero-padded input (batch on lanes).  Under jit this pad /
    # transpose fuses with neighbouring ops instead of being its own dispatch.
    xt = jnp.zeros((D_pad, b_pad), jnp.float32)
    xt = xt.at[:D, :B].set(x.T.astype(jnp.float32))

    w1c = jnp.zeros((H, D_pad), jnp.float32).at[:, :D].set(w1.astype(jnp.float32))
    b1c = b1.reshape(H, 1).astype(jnp.float32)
    w2c = jnp.zeros((O_pad, H), jnp.float32).at[:O, :].set(w2.astype(jnp.float32))
    # Padded logit rows get a huge negative bias so the in-kernel softmax
    # (reduction over axis 0) is unaffected by the O -> O_pad padding.
    b2c = jnp.full((O_pad, 1), -1e30, jnp.float32).at[:O, 0].set(b2.astype(jnp.float32))

    kernel = functools.partial(_mlp_kernel, apply_softmax=apply_softmax)

    out_t = pl.pallas_call(
        kernel,
        out_shape=jax.ShapeDtypeStruct((O_pad, b_pad), jnp.float32),
        grid=(b_pad // tb,),
        in_specs=[
            pl.BlockSpec((D_pad, tb), lambda i: (0, i)),   # x^T tile (lane-dense)
            pl.BlockSpec((H, D_pad), lambda i: (0, 0)),    # W1 (resident)
            pl.BlockSpec((H, 1), lambda i: (0, 0)),        # b1
            pl.BlockSpec((O_pad, H), lambda i: (0, 0)),    # W2 (resident)
            pl.BlockSpec((O_pad, 1), lambda i: (0, 0)),    # b2
        ],
        out_specs=pl.BlockSpec((O_pad, tb), lambda i: (0, i)),
        compiler_params=pltpu.CompilerParams(
            dimension_semantics=("parallel",)),
    )(xt, w1c, b1c, w2c, b2c)

    # Back to the PyTorch layout (batch, output_dim), dropping all padding.
    return out_t[:O, :B].T


if __name__ == "__main__":
    key = jax.random.PRNGKey(0)
    kx, kw1, kb1, kw2, kb2 = jax.random.split(key, 5)

    batch = 8

    # Deterministic parameter init (matches nn.Linear's U(-1/sqrt(fan_in), ...)).
    bound1 = 1.0 / jnp.sqrt(jnp.float32(INPUT_DIM))
    w1 = jax.random.uniform(kw1, (HIDDEN_DIM, INPUT_DIM), jnp.float32, -bound1, bound1)
    b1 = jax.random.uniform(kb1, (HIDDEN_DIM,), jnp.float32, -bound1, bound1)
    bound2 = 1.0 / jnp.sqrt(jnp.float32(HIDDEN_DIM))
    w2 = jax.random.uniform(kw2, (OUTPUT_DIM, HIDDEN_DIM), jnp.float32, -bound2, bound2)
    b2 = jax.random.uniform(kb2, (OUTPUT_DIM,), jnp.float32, -bound2, bound2)

    x = jax.random.normal(kx, (batch, INPUT_DIM), jnp.float32)

    # Default forward (no softmax), matching MultilayerPerceptron.forward.
    y = mlp_forward(x, w1, b1, w2, b2)
    jax.block_until_ready(y)

    # Pure-JAX reference (HIGHEST precision so the reference dot is full f32).
    hp = jax.lax.Precision.HIGHEST
    h_ref = jnp.maximum(jnp.dot(x, w1.T, precision=hp) + b1, 0.0)
    y_ref = jnp.dot(h_ref, w2.T, precision=hp) + b2

    assert y.shape == (batch, OUTPUT_DIM)
    # Tolerance allows for MXU f32 multi-pass rounding vs XLA's f32 dot.
    assert jnp.allclose(y, y_ref, atol=2e-2, rtol=2e-2)

    # apply_softmax=True path (uses the approx EUP reciprocal).
    y_sm = mlp_forward(x, w1, b1, w2, b2, apply_softmax=True)
    jax.block_until_ready(y_sm)
    y_sm_ref = jax.nn.softmax(y_ref, axis=1)
    assert y_sm.shape == (batch, OUTPUT_DIM)
    assert jnp.allclose(y_sm, y_sm_ref, atol=2e-2, rtol=2e-2)

    print("KERNEL_OK")
</pallas_src>

<mosaic_0001>
module attributes {stable_mosaic.version = 11 : i64} {
  func.func @_mlp_kernel(%arg0: i32, %arg1: memref<8x128xf32, #tpu.memory_space<vmem>>, %arg2: memref<100x8xf32, #tpu.memory_space<vmem>>, %arg3: memref<100x1xf32, #tpu.memory_space<vmem>>, %arg4: memref<8x100xf32, #tpu.memory_space<vmem>>, %arg5: memref<8x1xf32, #tpu.memory_space<vmem>>, %arg6: memref<8x128xf32, #tpu.memory_space<vmem>>) attributes {dimension_semantics = [#tpu.dimension_semantics<parallel>], iteration_bounds = array<i64: 1>, scalar_prefetch = 0 : i64, scratch_operands = 0 : i64, tpu.core_type = #tpu.core_type<tc>, window_params = [{transform_indices = @transform_0, window_bounds = array<i64: 8, 128>}, {pipeline_mode = #tpu.pipeline_mode<synchronous>, transform_indices = @transform_1, window_bounds = array<i64: 100, 8>}, {pipeline_mode = #tpu.pipeline_mode<synchronous>, transform_indices = @transform_2, window_bounds = array<i64: 100, 1>}, {pipeline_mode = #tpu.pipeline_mode<synchronous>, transform_indices = @transform_3, window_bounds = array<i64: 8, 100>}, {pipeline_mode = #tpu.pipeline_mode<synchronous>, transform_indices = @transform_4, window_bounds = array<i64: 8, 1>}, {transform_indices = @transform_5, window_bounds = array<i64: 8, 128>}]} {
    %c0 = arith.constant 0 : index
    %c0_0 = arith.constant 0 : index
    %0 = vector.load %arg1[%c0, %c0_0] : memref<8x128xf32, #tpu.memory_space<vmem>>, vector<8x128xf32>
    %c0_1 = arith.constant 0 : index
    %c0_2 = arith.constant 0 : index
    %1 = vector.load %arg2[%c0_1, %c0_2] : memref<100x8xf32, #tpu.memory_space<vmem>>, vector<100x8xf32>
    %cst = arith.constant dense<0.000000e+00> : vector<100x128xf32>
    %2 = tpu.matmul %1, %0, %cst {dimension_numbers = #tpu.dot_dimension_numbers<[1], [0], [0], [1], [0, 0, 1, 1], [], []>} : vector<100x8xf32>, vector<8x128xf32>, vector<100x128xf32> -> vector<100x128xf32>
    %c0_3 = arith.constant 0 : index
    %c0_4 = arith.constant 0 : index
    %3 = vector.load %arg3[%c0_3, %c0_4] : memref<100x1xf32, #tpu.memory_space<vmem>>, vector<100x1xf32>
    %4 = vector.broadcast %3 : vector<100x1xf32> to vector<100x128xf32>
    %5 = arith.addf %2, %4 : vector<100x128xf32>
    %cst_5 = arith.constant 0.000000e+00 : f32
    %6 = vector.broadcast %cst_5 : f32 to vector<100x128xf32>
    %7 = arith.maximumf %5, %6 : vector<100x128xf32>
    %c0_6 = arith.constant 0 : index
    %c0_7 = arith.constant 0 : index
    %8 = vector.load %arg4[%c0_6, %c0_7] : memref<8x100xf32, #tpu.memory_space<vmem>>, vector<8x100xf32>
    %cst_8 = arith.constant dense<0.000000e+00> : vector<8x128xf32>
    %9 = tpu.matmul %8, %7, %cst_8 {dimension_numbers = #tpu.dot_dimension_numbers<[1], [0], [0], [1], [0, 0, 1, 1], [], []>} : vector<8x100xf32>, vector<100x128xf32>, vector<8x128xf32> -> vector<8x128xf32>
    %c0_9 = arith.constant 0 : index
    %c0_10 = arith.constant 0 : index
    %10 = vector.load %arg5[%c0_9, %c0_10] : memref<8x1xf32, #tpu.memory_space<vmem>>, vector<8x1xf32>
    %11 = vector.broadcast %10 : vector<8x1xf32> to vector<8x128xf32>
    %12 = arith.addf %9, %11 : vector<8x128xf32>
    %c0_11 = arith.constant 0 : index
    %c0_12 = arith.constant 0 : index
    %13 = vector.load %arg6[%c0_11, %c0_12] : memref<8x128xf32, #tpu.memory_space<vmem>>, vector<8x128xf32>
    tpu.vector_store %arg6[%c0_11, %c0_12], %12 {strides = array<i32>} : memref<8x128xf32, #tpu.memory_space<vmem>>, vector<8x128xf32>,
    return
  }
  func.func @transform_0(%arg0: i32) -> (i32, i32) {
    %c0_i32 = arith.constant 0 : i32
    %c0_i32_0 = arith.constant 0 : i32
    return %c0_i32, %arg0 : i32, i32
  }
  func.func @transform_1(%arg0: i32) -> (i32, i32) {
    %c0_i32 = arith.constant 0 : i32
    %c0_i32_0 = arith.constant 0 : i32
    %c0_i32_1 = arith.constant 0 : i32
    return %c0_i32, %c0_i32_0 : i32, i32
  }
  func.func @transform_2(%arg0: i32) -> (i32, i32) {
    %c0_i32 = arith.constant 0 : i32
    %c0_i32_0 = arith.constant 0 : i32
    %c0_i32_1 = arith.constant 0 : i32
    return %c0_i32, %c0_i32_0 : i32, i32
  }
  func.func @transform_3(%arg0: i32) -> (i32, i32) {
    %c0_i32 = arith.constant 0 : i32
    %c0_i32_0 = arith.constant 0 : i32
    %c0_i32_1 = arith.constant 0 : i32
    return %c0_i32, %c0_i32_0 : i32, i32
  }
  func.func @transform_4(%arg0: i32) -> (i32, i32) {
    %c0_i32 = arith.constant 0 : i32
    %c0_i32_0 = arith.constant 0 : i32
    %c0_i32_1 = arith.constant 0 : i32
    return %c0_i32, %c0_i32_0 : i32, i32
  }
  func.func @transform_5(%arg0: i32) -> (i32, i32) {
    %c0_i32 = arith.constant 0 : i32
    %c0_i32_0 = arith.constant 0 : i32
    return %c0_i32, %arg0 : i32, i32
  }
}

</mosaic_0001>

<llo_original>
// kernel: mlp_forward.1
$region0: #{mlp_forward.1}
  #allocation0 [shape = 'u32[]', space=smem, size = 0x4, offset = 0x4, fixed_abs, tag = 'smem constant byte address 0x4 - core index']
  #allocation1 [shape = 'u32[144,128]{1,0:T(1,128)}', space=vmem, size = 0x12000, scoped, tag = 'internal scratch']
  %s0 = inlined_call_operand.vmem [shape: f32[8,128], index: 0, kind: input, shape index: {}]
  %s1 = inlined_call_operand.vmem [shape: f32[100,8], index: 1, kind: input, shape index: {}]
  %s2 = inlined_call_operand.vmem [shape: f32[100,1], index: 2, kind: input, shape index: {}]
  %s3 = inlined_call_operand.vmem [shape: f32[8,100], index: 3, kind: input, shape index: {}]
  %s4 = inlined_call_operand.vmem [shape: f32[8,1], index: 4, kind: input, shape index: {}]
  %s5 = inlined_call_operand.vmem [shape: f32[8,128], index: 5, kind: output, shape index: {}]
  %s6 = sld [smem:[#allocation0]]
  $region30: #{mlp_forward.1} parent=0
    _
  %s8 = ssub.s32 1, %s6
  %s9 = scalar_select 0, %s8, %s6
  // Predicated region
  $region2: #{mlp_forward.1} parent=0 // pred_check
    _
  $region3: #{mlp_forward.1} parent=0 // pred_check_branch
    %11 = sbr.rel (0) target = $region5
  $region4: #{mlp_forward.1} parent=0 // pred_region
    _
  $region5: #{mlp_forward.1} parent=0 // pred_fallthru
    _
  // Predicated region
  $region6: #{mlp_forward.1} parent=0 // pred_check
    _
  $region7: #{mlp_forward.1} parent=0 // pred_check_branch
    %13 = sbr.rel (0) target = $region9
  $region8: #{mlp_forward.1} parent=0 // pred_region
    _
  $region9: #{mlp_forward.1} parent=0 // pred_fallthru
    _
  // Predicated region
  $region10: #{mlp_forward.1} parent=0 // pred_check
    _
  $region11: #{mlp_forward.1} parent=0 // pred_check_branch
    %15 = sbr.rel (0) target = $region13
  $region12: #{mlp_forward.1} parent=0 // pred_region
    _
  $region13: #{mlp_forward.1} parent=0 // pred_fallthru
    _
  // Predicated region
  $region14: #{mlp_forward.1} parent=0 // pred_check
    _
  $region15: #{mlp_forward.1} parent=0 // pred_check_branch
    %17 = sbr.rel (0) target = $region17
  $region16: #{mlp_forward.1} parent=0 // pred_region
    _
  $region17: #{mlp_forward.1} parent=0 // pred_fallthru
    _
  // Predicated region
  $region18: #{mlp_forward.1} parent=0 // pred_check
    _
  $region19: #{mlp_forward.1} parent=0 // pred_check_branch
    %19 = sbr.rel (0) target = $region21
  $region20: #{mlp_forward.1} parent=0 // pred_region
    _
  $region21: #{mlp_forward.1} parent=0 // pred_fallthru
    _
  %v20 = vld [vmem:[%s0] sm:$0xff]
  %v21 = vld [vmem:[%s1] sm:$0xff]
  %v22 = vld [vmem:[%s1 + $0x8] sm:$0xff]
  %v23 = vld [vmem:[%s1 + $0x10] sm:$0xff]
  %v24 = vld [vmem:[%s1 + $0x18] sm:$0xff]
  %v25 = vld [vmem:[%s1 + $0x20] sm:$0xff]
  %v26 = vld [vmem:[%s1 + $0x28] sm:$0xff]
  %v27 = vld [vmem:[%s1 + $0x30] sm:$0xff]
  %v28 = vld [vmem:[%s1 + $0x38] sm:$0xff]
  %v29 = vld [vmem:[%s1 + $0x40] sm:$0xff]
  %v30 = vld [vmem:[%s1 + $0x48] sm:$0xff]
  %v31 = vld [vmem:[%s1 + $0x50] sm:$0xff]
  %v32 = vld [vmem:[%s1 + $0x58] sm:$0xff]
  %v33 = vld [vmem:[%s1 + $0x60] sm:$0xf]
  %v34 = vld [vmem:[%s2] sm:$0xff]
  %v35 = vld [vmem:[%s2 + $0x8] sm:$0xff]
  %v36 = vld [vmem:[%s2 + $0x10] sm:$0xff]
  %v37 = vld [vmem:[%s2 + $0x18] sm:$0xff]
  %v38 = vld [vmem:[%s2 + $0x20] sm:$0xff]
  %v39 = vld [vmem:[%s2 + $0x28] sm:$0xff]
  %v40 = vld [vmem:[%s2 + $0x30] sm:$0xff]
  %v41 = vld [vmem:[%s2 + $0x38] sm:$0xff]
  %v42 = vld [vmem:[%s2 + $0x40] sm:$0xff]
  %v43 = vld [vmem:[%s2 + $0x48] sm:$0xff]
  %v44 = vld [vmem:[%s2 + $0x50] sm:$0xff]
  %v45 = vld [vmem:[%s2 + $0x58] sm:$0xff]
  %v46 = vld [vmem:[%s2 + $0x60] sm:$0xf]
  %48 = vset.pattern.permute.xlu0 0
  %49 = vperm.xlu0 %48, %v34
  %v50 = vpop.permute.xlu0 %49
  %53 = vset.pattern.permute.xlu0 0
  %54 = vperm.xlu0 %53, %v35
  %v55 = vpop.permute.xlu0 %54
  %58 = vset.pattern.permute.xlu0 0
  %59 = vperm.xlu0 %58, %v36
  %v60 = vpop.permute.xlu0 %59
  %63 = vset.pattern.permute.xlu0 0
  %64 = vperm.xlu0 %63, %v37
  %v65 = vpop.permute.xlu0 %64
  %68 = vset.pattern.permute.xlu0 0
  %69 = vperm.xlu0 %68, %v38
  %v70 = vpop.permute.xlu0 %69
  %73 = vset.pattern.permute.xlu0 0
  %74 = vperm.xlu0 %73, %v39
  %v75 = vpop.permute.xlu0 %74
  %78 = vset.pattern.permute.xlu0 0
  %79 = vperm.xlu0 %78, %v40
  %v80 = vpop.permute.xlu0 %79
  %83 = vset.pattern.permute.xlu0 0
  %84 = vperm.xlu0 %83, %v41
  %v85 = vpop.permute.xlu0 %84
  %88 = vset.pattern.permute.xlu0 0
  %89 = vperm.xlu0 %88, %v42
  %v90 = vpop.permute.xlu0 %89
  %93 = vset.pattern.permute.xlu0 0
  %94 = vperm.xlu0 %93, %v43
  %v95 = vpop.permute.xlu0 %94
  %98 = vset.pattern.permute.xlu0 0
  %99 = vperm.xlu0 %98, %v44
  %v100 = vpop.permute.xlu0 %99
  %103 = vset.pattern.permute.xlu0 0
  %104 = vperm.xlu0 %103, %v45
  %v105 = vpop.permute.xlu0 %104
  %108 = vset.pattern.permute.xlu0 0
  %109 = vperm.xlu0 %108, %v46
  %v110 = vpop.permute.xlu0 %109
  %vm112 = vcmask 64512
  %v114 = vsel %vm112, %v21, 0
  %v117 = vsel %vm112, %v22, 0
  %v120 = vsel %vm112, %v23, 0
  %v123 = vsel %vm112, %v24, 0
  %v126 = vsel %vm112, %v25, 0
  %v129 = vsel %vm112, %v26, 0
  %v132 = vsel %vm112, %v27, 0
  %v135 = vsel %vm112, %v28, 0
  %v138 = vsel %vm112, %v29, 0
  %v141 = vsel %vm112, %v30, 0
  %v144 = vsel %vm112, %v31, 0
  %v147 = vsel %vm112, %v32, 0
  %v150 = vsel %vm112, %v33, 0
  %152 = vmatprep.subr.mxu0 0.0
  %153 = vmatpush1.msra.mxu0 0.0
  %154 = vmatprep.subr.mxu0 0.0
  %155 = vmatpush1.msra.mxu0 0.0
  %156 = vmatprep.subr.mxu0 0.0
  %157 = vmatpush1.msra.mxu0 0.0
  %158 = vmatprep.subr.mxu0 0.0
  %159 = vmatpush1.msra.mxu0 0.0
  %160 = vmatprep.subr.mxu0 0.0
  %161 = vmatpush1.msra.mxu0 0.0
  %162 = vmatprep.subr.mxu0 0.0
  %163 = vmatpush1.msra.mxu0 0.0
  %164 = vmatprep.subr.mxu0 0.0
  %165 = vmatpush1.msra.mxu0 0.0
  %166 = vmatprep.subr.mxu0 0.0
  %167 = vmatpush1.msra.mxu0 0.0
  %168 = vmatprep.subr.mxu0 0.0
  %169 = vmatpush1.msra.mxu0 0.0
  %170 = vmatprep.subr.mxu0 0.0
  %171 = vmatpush1.msra.mxu0 0.0
  %172 = vmatprep.subr.mxu0 0.0
  %173 = vmatpush1.msra.mxu0 0.0
  %174 = vmatprep.subr.mxu0 0.0
  %175 = vmatpush1.msra.mxu0 0.0
  %176 = vmatprep.subr.mxu0 0.0
  %177 = vmatpush1.msra.mxu0 0.0
  %178 = vmatprep.subr.mxu0 0.0
  %179 = vmatpush1.msra.mxu0 0.0
  %180 = vmatprep.subr.mxu0 0.0
  %181 = vmatpush1.msra.mxu0 0.0
  %182 = vmatprep.subr.mxu0 0.0
  %183 = vmatpush1.msra.mxu0 %v20
  %184 = vmatprep.subr.mxu0 0.0
  %185 = vmatpush2.msra.mxu0 0.0
  %186 = vmatprep.subr.mxu0 0.0
  %187 = vmatpush2.msra.mxu0 0.0
  %188 = vmatprep.subr.mxu0 0.0
  %189 = vmatpush2.msra.mxu0 0.0
  %190 = vmatprep.subr.mxu0 0.0
  %191 = vmatpush2.msra.mxu0 0.0
  %192 = vmatprep.subr.mxu0 0.0
  %193 = vmatpush2.msra.mxu0 0.0
  %194 = vmatprep.subr.mxu0 0.0
  %195 = vmatpush2.msra.mxu0 0.0
  %196 = vmatprep.subr.mxu0 0.0
  %197 = vmatpush2.msra.mxu0 0.0
  %198 = vmatprep.subr.mxu0 0.0
  %199 = vmatpush2.msra.mxu0 0.0
  %200 = vmatprep.subr.mxu0 0.0
  %201 = vmatpush2.msra.mxu0 0.0
  %202 = vmatprep.subr.mxu0 0.0
  %203 = vmatpush2.msra.mxu0 0.0
  %204 = vmatprep.subr.mxu0 0.0
  %205 = vmatpush2.msra.mxu0 0.0
  %206 = vmatprep.subr.mxu0 0.0
  %207 = vmatpush2.msra.mxu0 0.0
  %208 = vmatprep.subr.mxu0 0.0
  %209 = vmatpush2.msra.mxu0 0.0
  %210 = vmatprep.subr.mxu0 0.0
  %211 = vmatpush2.msra.mxu0 0.0
  %212 = vmatprep.subr.mxu0 0.0
  %213 = vmatpush2.msra.mxu0 0.0
  %214 = vmatprep.subr.mxu0 0.0
  %215 = vmatpush2.msra.mxu0 0.0
  %216 = vmatprep.mubr.f32.mxu0 0.0
  %217 = vmatmul.mubr.f32.gmra.mxu0 %v114
  %v218 = vpop.f32.mrf.mxu0
  %v219 = vadd.f32 %v50, %v218
  %v220 = vpop.f32.mrf.mxu0
  %221 = vmatprep.mubr.f32.mxu0 0.0
  %222 = vmatmul.mubr.f32.gmra.mxu0 %v117
  %v223 = vpop.f32.mrf.mxu0
  %v224 = vadd.f32 %v55, %v223
  %v225 = vpop.f32.mrf.mxu0
  %226 = vmatprep.mubr.f32.mxu0 0.0
  %227 = vmatmul.mubr.f32.gmra.mxu0 %v120
  %v228 = vpop.f32.mrf.mxu0
  %v229 = vadd.f32 %v60, %v228
  %v230 = vpop.f32.mrf.mxu0
  %231 = vmatprep.mubr.f32.mxu0 0.0
  %232 = vmatmul.mubr.f32.gmra.mxu0 %v123
  %v233 = vpop.f32.mrf.mxu0
  %v234 = vadd.f32 %v65, %v233
  %v235 = vpop.f32.mrf.mxu0
  %236 = vmatprep.mubr.f32.mxu0 0.0
  %237 = vmatmul.mubr.f32.gmra.mxu0 %v126
  %v238 = vpop.f32.mrf.mxu0
  %v239 = vadd.f32 %v70, %v238
  %v240 = vpop.f32.mrf.mxu0
  %241 = vmatprep.mubr.f32.mxu0 0.0
  %242 = vmatmul.mubr.f32.gmra.mxu0 %v129
  %v243 = vpop.f32.mrf.mxu0
  %v244 = vadd.f32 %v75, %v243
  %v245 = vpop.f32.mrf.mxu0
  %246 = vmatprep.mubr.f32.mxu0 0.0
  %247 = vmatmul.mubr.f32.gmra.mxu0 %v132
  %v248 = vpop.f32.mrf.mxu0
  %v249 = vadd.f32 %v80, %v248
  %v250 = vpop.f32.mrf.mxu0
  %251 = vmatprep.mubr.f32.mxu0 0.0
  %252 = vmatmul.mubr.f32.gmra.mxu0 %v135
  %v253 = vpop.f32.mrf.mxu0
  %v254 = vadd.f32 %v85, %v253
  %v255 = vpop.f32.mrf.mxu0
  %256 = vmatprep.mubr.f32.mxu0 0.0
  %257 = vmatmul.mubr.f32.gmra.mxu0 %v138
  %v258 = vpop.f32.mrf.mxu0
  %v259 = vadd.f32 %v90, %v258
  %v260 = vpop.f32.mrf.mxu0
  %261 = vmatprep.mubr.f32.mxu0 0.0
  %262 = vmatmul.mubr.f32.gmra.mxu0 %v141
  %v263 = vpop.f32.mrf.mxu0
  %v264 = vadd.f32 %v95, %v263
  %v265 = vpop.f32.mrf.mxu0
  %266 = vmatprep.mubr.f32.mxu0 0.0
  %267 = vmatmul.mubr.f32.gmra.mxu0 %v144
  %v268 = vpop.f32.mrf.mxu0
  %v269 = vadd.f32 %v100, %v268
  %v270 = vpop.f32.mrf.mxu0
  %271 = vmatprep.mubr.f32.mxu0 0.0
  %272 = vmatmul.mubr.f32.gmra.mxu0 %v147
  %v273 = vpop.f32.mrf.mxu0
  %v274 = vadd.f32 %v105, %v273
  %v275 = vpop.f32.mrf.mxu0
  %276 = vmatprep.mubr.f32.mxu0 0.0
  %277 = vmatmul.mubr.f32.gmra.mxu0 %v150
  %v278 = vpop.f32.mrf.mxu0
  %v279 = vadd.f32 %v110, %v278
  %v280 = vpop.f32.mrf.mxu0
  %281 = vdwg.mxu0
  %v282 = vmax.f32 %v219, 0.0
  %v283 = vmax.f32 %v224, 0.0
  %v284 = vmax.f32 %v229, 0.0
  %v285 = vmax.f32 %v234, 0.0
  %v286 = vmax.f32 %v239, 0.0
  %v287 = vmax.f32 %v244, 0.0
  %v288 = vmax.f32 %v249, 0.0
  %v289 = vmax.f32 %v254, 0.0
  %v290 = vmax.f32 %v259, 0.0
  %v291 = vmax.f32 %v264, 0.0
  %v292 = vmax.f32 %v269, 0.0
  %v293 = vmax.f32 %v274, 0.0
  %v294 = vmax.f32 %v279, 0.0
  %v295 = vld [vmem:[%s3] sm:$0xff]
  %v296 = vld [vmem:[%s4] sm:$0xff]
  %298 = vset.pattern.permute.xlu0 0
  %299 = vperm.xlu0 %298, %v296
  %v300 = vpop.permute.xlu0 %299
  %vm302 = vcmask 818176
  %v304 = vsel %vm302, %v295, 0
  %vm306 = vcmask 1043456
  %v308 = vsel %vm306, %v294, 0
  %310 = vmatprep.subr.mxu0 0.0
  %311 = vmatpush1.msra.mxu0 0.0
  %312 = vmatprep.subr.mxu0 0.0
  %313 = vmatpush1.msra.mxu0 0.0
  %314 = vmatprep.subr.mxu0 0.0
  %315 = vmatpush1.msra.mxu0 0.0
  %316 = vmatprep.subr.mxu0 0.0
  %317 = vmatpush1.msra.mxu0 %v308
  %318 = vmatprep.subr.mxu0 0.0
  %319 = vmatpush1.msra.mxu0 %v293
  %320 = vmatprep.subr.mxu0 0.0
  %321 = vmatpush1.msra.mxu0 %v292
  %322 = vmatprep.subr.mxu0 0.0
  %323 = vmatpush1.msra.mxu0 %v291
  %324 = vmatprep.subr.mxu0 0.0
  %325 = vmatpush1.msra.mxu0 %v290
  %326 = vmatprep.subr.mxu0 0.0
  %327 = vmatpush1.msra.mxu0 %v289
  %328 = vmatprep.subr.mxu0 0.0
  %329 = vmatpush1.msra.mxu0 %v288
  %330 = vmatprep.subr.mxu0 0.0
  %331 = vmatpush1.msra.mxu0 %v287
  %332 = vmatprep.subr.mxu0 0.0
  %333 = vmatpush1.msra.mxu0 %v286
  %334 = vmatprep.subr.mxu0 0.0
  %335 = vmatpush1.msra.mxu0 %v285
  %336 = vmatprep.subr.mxu0 0.0
  %337 = vmatpush1.msra.mxu0 %v284
  %338 = vmatprep.subr.mxu0 0.0
  %339 = vmatpush1.msra.mxu0 %v283
  %340 = vmatprep.subr.mxu0 0.0
  %341 = vmatpush1.msra.mxu0 %v282
  %342 = vmatprep.subr.mxu0 0.0
  %343 = vmatpush2.msra.mxu0 0.0
  %344 = vmatprep.subr.mxu0 0.0
  %345 = vmatpush2.msra.mxu0 0.0
  %346 = vmatprep.subr.mxu0 0.0
  %347 = vmatpush2.msra.mxu0 0.0
  %348 = vmatprep.subr.mxu0 0.0
  %349 = vmatpush2.msra.mxu0 0.0
  %350 = vmatprep.subr.mxu0 0.0
  %351 = vmatpush2.msra.mxu0 0.0
  %352 = vmatprep.subr.mxu0 0.0
  %353 = vmatpush2.msra.mxu0 0.0
  %354 = vmatprep.subr.mxu0 0.0
  %355 = vmatpush2.msra.mxu0 0.0
  %356 = vmatprep.subr.mxu0 0.0
  %357 = vmatpush2.msra.mxu0 0.0
  %358 = vmatprep.subr.mxu0 0.0
  %359 = vmatpush2.msra.mxu0 0.0
  %360 = vmatprep.subr.mxu0 0.0
  %361 = vmatpush2.msra.mxu0 0.0
  %362 = vmatprep.subr.mxu0 0.0
  %363 = vmatpush2.msra.mxu0 0.0
  %364 = vmatprep.subr.mxu0 0.0
  %365 = vmatpush2.msra.mxu0 0.0
  %366 = vmatprep.subr.mxu0 0.0
  %367 = vmatpush2.msra.mxu0 0.0
  %368 = vmatprep.subr.mxu0 0.0
  %369 = vmatpush2.msra.mxu0 0.0
  %370 = vmatprep.subr.mxu0 0.0
  %371 = vmatpush2.msra.mxu0 0.0
  %372 = vmatprep.subr.mxu0 0.0
  %373 = vmatpush2.msra.mxu0 0.0
  %374 = vmatprep.mubr.f32.mxu0 0.0
  %375 = vmatmul.mubr.f32.gmra.mxu0 %v304
  %v376 = vpop.f32.mrf.mxu0
  %v377 = vadd.f32 %v300, %v376
  %v378 = vpop.f32.mrf.mxu0
  %379 = vdwg.mxu0
  %380 = vst [vmem:[%s5] sm:$0xff] %v377
  // Predicated region
  $region22: #{mlp_forward.1} parent=0 // pred_check
    _
  $region23: #{mlp_forward.1} parent=0 // pred_check_branch
    %382 = sbr.rel (0) target = $region25
  $region24: #{mlp_forward.1} parent=0 // pred_region
    _
  $region25: #{mlp_forward.1} parent=0 // pred_fallthru
    _
  // Predicated region
  $region26: #{mlp_forward.1} parent=0 // pred_check
    _
  $region27: #{mlp_forward.1} parent=0 // pred_check_branch
    %384 = sbr.rel (0) target = $region29
  $region28: #{mlp_forward.1} parent=0 // pred_region
    _
  $region29: #{mlp_forward.1} parent=0 // pred_fallthru
    _

</llo_original>
